<compile_context>
chip_gen: v5e
topology: v5e:2x2
jax: 0.10.0
libtpu: 0.0.40
codegen_flags: <defaults>
</compile_context>

<pallas_src>
import math

import jax
import jax.numpy as jnp
from jax.experimental import pallas as pl
from jax.experimental.pallas import tpu as pltpu


def _round_up(a, b):
    return ((a + b - 1) // b) * b


def _cdiv(a, b):
    return -(-a // b)


def _tpu_defaults():
    """Generation-specific tile sizes and scoped-VMEM limits."""
    kind = ""
    try:
        kind = jax.devices()[0].device_kind.lower()
    except Exception:
        pass
    if "v6" in kind:
        # 128 MiB VMEM, HBM crossover ~656 flops/B -> need big token tiles.
        return dict(tm=1024, th=1024, vmem=100 * 1024 * 1024)
    if "v5" in kind:
        # 128 MiB VMEM, 197 TF/s bf16; tm=512 hides per-step weight DMA.
        return dict(tm=512, th=512, vmem=64 * 1024 * 1024)
    # v7x (64 MiB VMEM per TC) or unknown: leave headroom for pipeline scratch.
    return dict(tm=512, th=512, vmem=48 * 1024 * 1024)


def _pick_tm(M, tm_max):
    """Near-equal M tiling: multiple-of-8 tiles, capped at tm_max; use >=2
    tiles when there are enough rows so both v7x TensorCores get work."""
    Mp8 = _round_up(max(M, 1), 8)
    tm_max = max(8, _round_up(tm_max, 8))
    n_tiles = max(1, _cdiv(Mp8, tm_max))
    if n_tiles == 1 and Mp8 >= 512:
        n_tiles = 2  # megacore occupancy guard (v7x has 2 TCs)
    return _round_up(_cdiv(Mp8, n_tiles), 8)


def _padded_dims(Cw, Hw, th):
    Cp = _round_up(Cw, 128)                    # lane-dense embedding dim
    th_eff = min(max(128, _round_up(th, 128)), _round_up(Hw, 128))
    Hp = _round_up(Hw, th_eff)
    return Cp, Hp, th_eff


def pad_mlp_params(w_fc, b_fc, w_proj, b_proj, *, th=None):
    """Pad parameters to tileable shapes ONCE at init (hoists the per-call
    jnp.pad of the weights out of the hot path).  No-op for aligned configs."""
    if th is None:
        th = _tpu_defaults()["th"]
    Cw, Hw = w_fc.shape
    Cp, Hp, _ = _padded_dims(Cw, Hw, th)
    b_fc2 = jnp.asarray(b_fc).reshape(1, -1)
    b_proj2 = jnp.asarray(b_proj).reshape(1, -1)
    if (Cp, Hp) == (Cw, Hw):
        return w_fc, b_fc2, w_proj, b_proj2
    return (jnp.pad(w_fc, ((0, Cp - Cw), (0, Hp - Hw))),
            jnp.pad(b_fc2, ((0, 0), (0, Hp - Hw))),
            jnp.pad(w_proj, ((0, Hp - Hw), (0, Cp - Cw))),
            jnp.pad(b_proj2, ((0, 0), (0, Cp - Cw))))


def _make_mlp_kernel(compute_dtype):
    def kernel(x_ref, wfc_ref, bfc_ref, wproj_ref, bproj_ref, o_ref, acc_ref):
        # x_ref:     (tm, Cp)      token tile
        # wfc_ref:   (Cp, th)      c_fc weight column tile
        # bfc_ref:   (1, th)       c_fc bias tile
        # wproj_ref: (th, Cp)      c_proj weight row tile
        # bproj_ref: (1, Cp)       c_proj bias (constant across grid)
        # o_ref:     (tm, Cp)      output tile (written only at last h step)
        # acc_ref:   (tm, Cp) f32  c_proj partial-sum accumulator (VMEM scratch)
        h_idx = pl.program_id(1)

        @pl.when(h_idx == 0)
        def _init():
            acc_ref[...] = jnp.zeros_like(acc_ref)

        x = x_ref[...]
        wfc = wfc_ref[...]
        wproj = wproj_ref[...]
        if compute_dtype is not None:
            x = x.astype(compute_dtype)
            wfc = wfc.astype(compute_dtype)
            wproj = wproj.astype(compute_dtype)

        # c_fc: MXU matmul in operand dtype, f32 accumulation.
        h = jnp.dot(x, wfc, preferred_element_type=jnp.float32)
        h = h + bfc_ref[...].astype(jnp.float32)

        # GELU, tanh approximation (matches torch.nn.GELU(approximate='tanh')).
        c = 0.7978845608028654  # sqrt(2/pi)
        g = 0.5 * h * (1.0 + jnp.tanh(c * (h + 0.044715 * (h * h * h))))

        # Partial c_proj: cast activations back to the matmul dtype so the
        # second matmul also runs at full MXU rate; accumulate in f32.
        acc_ref[...] += jnp.dot(g.astype(wproj.dtype), wproj,
                                preferred_element_type=jnp.float32)

        @pl.when(h_idx == pl.num_programs(1) - 1)
        def _finalize():
            out = acc_ref[...] + bproj_ref[...].astype(jnp.float32)
            o_ref[...] = out.astype(o_ref.dtype)

    return kernel


def mlp_pallas(x, w_fc, b_fc, w_proj, b_proj, *, tm=None, th=None,
               vmem_limit_bytes=None, compute_dtype=None):
    """x: (..., C). w_fc: (C[,pad], 4C[,pad]). b_fc: (4C,)|(1,4C).
    w_proj: (4C[,pad], C[,pad]). b_proj: (C,)|(1,C).

    Weights are stored pre-transposed as (in_features, out_features) relative
    to PyTorch's nn.Linear (out, in) layout.  Parameters may optionally be
    pre-padded via pad_mlp_params (per-call padding is then skipped).
    """
    defaults = _tpu_defaults()
    tm = defaults["tm"] if tm is None else tm
    th = defaults["th"] if th is None else th
    vmem_limit_bytes = defaults["vmem"] if vmem_limit_bytes is None else vmem_limit_bytes

    lead_shape = x.shape[:-1]
    C = x.shape[-1]
    M = math.prod(lead_shape) if lead_shape else 1
    dtype = x.dtype

    Cw, Hw = w_fc.shape
    Cp, Hp, th_eff = _padded_dims(Cw, Hw, th)
    tm_eff = _pick_tm(M, tm)
    Mp = _round_up(M, tm_eff)

    # ---- activations: pad per call (small vs. weights) ---------------------
    x2 = x.reshape(M, C)
    if (Mp, Cp) != (M, C):
        x2 = jnp.pad(x2, ((0, Mp - M), (0, Cp - C)))

    # ---- parameters: skip padding when already aligned / pre-padded --------
    b_fc2 = jnp.asarray(b_fc).reshape(1, -1)
    b_proj2 = jnp.asarray(b_proj).reshape(1, -1)
    if (Cw, Hw) != (Cp, Hp):
        # Prefer hoisting this to init via pad_mlp_params for production use.
        w_fc = jnp.pad(w_fc, ((0, Cp - Cw), (0, Hp - Hw)))
        w_proj = jnp.pad(w_proj, ((0, Hp - Hw), (0, Cp - Cw)))
    if b_fc2.shape[1] != Hp:
        b_fc2 = jnp.pad(b_fc2, ((0, 0), (0, Hp - b_fc2.shape[1])))
    if b_proj2.shape[1] != Cp:
        b_proj2 = jnp.pad(b_proj2, ((0, 0), (0, Cp - b_proj2.shape[1])))

    grid = (Mp // tm_eff, Hp // th_eff)

    out2 = pl.pallas_call(
        _make_mlp_kernel(compute_dtype),
        out_shape=jax.ShapeDtypeStruct((Mp, Cp), dtype),
        grid_spec=pltpu.PrefetchScalarGridSpec(
            num_scalar_prefetch=0,
            grid=grid,
            in_specs=[
                pl.BlockSpec((tm_eff, Cp), lambda i, h: (i, 0)),   # x tile
                pl.BlockSpec((Cp, th_eff), lambda i, h: (0, h)),   # W_fc col tile
                pl.BlockSpec((1, th_eff), lambda i, h: (0, h)),    # b_fc tile
                pl.BlockSpec((th_eff, Cp), lambda i, h: (h, 0)),   # W_proj row tile
                pl.BlockSpec((1, Cp), lambda i, h: (0, 0)),        # b_proj (const)
            ],
            out_specs=pl.BlockSpec((tm_eff, Cp), lambda i, h: (i, 0)),
            scratch_shapes=[pltpu.VMEM((tm_eff, Cp), jnp.float32)],
        ),
        compiler_params=pltpu.CompilerParams(
            dimension_semantics=("parallel", "arbitrary"),
            vmem_limit_bytes=vmem_limit_bytes,
        ),
    )(x2, w_fc, b_fc2, w_proj, b_proj2)

    return out2[:M, :C].reshape(*lead_shape, C)


def _reference_mlp(x, w_fc, b_fc, w_proj, b_proj):
    h = jnp.dot(x, w_fc) + b_fc
    g = jax.nn.gelu(h, approximate=True)
    return jnp.dot(g, w_proj) + b_proj


if __name__ == "__main__":
    # Small GPT-2-style config: B=2, T=8, n_embed=32, hidden=4*32=128
    B, T, C = 2, 8, 32
    H = 4 * C

    key = jax.random.PRNGKey(0)
    kx, kw1, kb1, kw2, kb2 = jax.random.split(key, 5)

    x = jax.random.normal(kx, (B, T, C), dtype=jnp.float32)

    # nn.Linear default init: U(-1/sqrt(fan_in), 1/sqrt(fan_in)); stored
    # pre-transposed as (in, out) for the kernel.
    bound_fc = 1.0 / (C ** 0.5)
    w_fc = jax.random.uniform(kw1, (C, H), jnp.float32, -bound_fc, bound_fc)
    b_fc = jax.random.uniform(kb1, (H,), jnp.float32, -bound_fc, bound_fc)

    bound_pr = 1.0 / (H ** 0.5)
    w_proj = jax.random.uniform(kw2, (H, C), jnp.float32, -bound_pr, bound_pr)
    b_proj = jax.random.uniform(kb2, (C,), jnp.float32, -bound_pr, bound_pr)

    ref = _reference_mlp(x, w_fc, b_fc, w_proj, b_proj)

    # 1) Exact-dtype path (f32 operands, f32 accumulation).
    out = mlp_pallas(x, w_fc, b_fc, w_proj, b_proj)
    out = jax.block_until_ready(out)
    assert out.shape == (B, T, C)
    assert jnp.allclose(out, ref, atol=1e-4, rtol=1e-4), "mismatch vs reference (f32)"

    # 2) Production-style path: params padded once at init, bf16 matmul operands.
    pw_fc, pb_fc, pw_proj, pb_proj = pad_mlp_params(w_fc, b_fc, w_proj, b_proj)
    out_bf16 = mlp_pallas(x, pw_fc, pb_fc, pw_proj, pb_proj,
                          compute_dtype=jnp.bfloat16)
    out_bf16 = jax.block_until_ready(out_bf16)
    assert out_bf16.shape == (B, T, C)
    assert jnp.allclose(out_bf16, ref, atol=5e-2, rtol=5e-2), "mismatch vs reference (bf16)"

    print("KERNEL_OK")
</pallas_src>

<mosaic_0001>
module attributes {stable_mosaic.version = 11 : i64} {
  func.func @kernel(%arg0: i32, %arg1: i32, %arg2: memref<16x128xf32, #tpu.memory_space<vmem>>, %arg3: memref<128x128xf32, #tpu.memory_space<vmem>>, %arg4: memref<1x128xf32, #tpu.memory_space<vmem>>, %arg5: memref<128x128xf32, #tpu.memory_space<vmem>>, %arg6: memref<1x128xf32, #tpu.memory_space<vmem>>, %arg7: memref<16x128xf32, #tpu.memory_space<vmem>>, %arg8: memref<16x128xf32, #tpu.memory_space<vmem>>) attributes {dimension_semantics = [#tpu.dimension_semantics<parallel>, #tpu.dimension_semantics<arbitrary>], iteration_bounds = array<i64: 1, 1>, scalar_prefetch = 0 : i64, scratch_operands = 1 : i64, tpu.core_type = #tpu.core_type<tc>, window_params = [{transform_indices = @transform_0, window_bounds = array<i64: 16, 128>}, {transform_indices = @transform_1, window_bounds = array<i64: 128, 128>}, {transform_indices = @transform_2, window_bounds = array<i64: 1, 128>}, {transform_indices = @transform_3, window_bounds = array<i64: 128, 128>}, {pipeline_mode = #tpu.pipeline_mode<synchronous>, transform_indices = @transform_4, window_bounds = array<i64: 1, 128>}, {transform_indices = @transform_5, window_bounds = array<i64: 16, 128>}]} {
    %c0_i32 = arith.constant 0 : i32
    %0 = arith.cmpi eq, %arg1, %c0_i32 : i32
    %1 = arith.extui %0 : i1 to i32
    %c0_i32_0 = arith.constant 0 : i32
    %2 = arith.cmpi ne, %1, %c0_i32_0 : i32
    scf.if %2 {
      %cst_19 = arith.constant 0.000000e+00 : f32
      %30 = vector.broadcast %cst_19 : f32 to vector<16x128xf32>
      %c0_20 = arith.constant 0 : index
      %c0_21 = arith.constant 0 : index
      %31 = vector.load %arg8[%c0_20, %c0_21] : memref<16x128xf32, #tpu.memory_space<vmem>>, vector<16x128xf32>
      tpu.vector_store %arg8[%c0_20, %c0_21], %30 {strides = array<i32>} : memref<16x128xf32, #tpu.memory_space<vmem>>, vector<16x128xf32>,
    } else {
    }
    %c0 = arith.constant 0 : index
    %c0_1 = arith.constant 0 : index
    %3 = vector.load %arg2[%c0, %c0_1] : memref<16x128xf32, #tpu.memory_space<vmem>>, vector<16x128xf32>
    %c0_2 = arith.constant 0 : index
    %c0_3 = arith.constant 0 : index
    %4 = vector.load %arg3[%c0_2, %c0_3] : memref<128x128xf32, #tpu.memory_space<vmem>>, vector<128x128xf32>
    %c0_4 = arith.constant 0 : index
    %c0_5 = arith.constant 0 : index
    %5 = vector.load %arg5[%c0_4, %c0_5] : memref<128x128xf32, #tpu.memory_space<vmem>>, vector<128x128xf32>
    %cst = arith.constant dense<0.000000e+00> : vector<16x128xf32>
    %6 = tpu.matmul %3, %4, %cst {dimension_numbers = #tpu.dot_dimension_numbers<[1], [0], [0], [1], [0, 0, 1, 1], [], []>} : vector<16x128xf32>, vector<128x128xf32>, vector<16x128xf32> -> vector<16x128xf32>
    %c0_6 = arith.constant 0 : index
    %c0_7 = arith.constant 0 : index
    %7 = vector.load %arg4[%c0_6, %c0_7] : memref<1x128xf32, #tpu.memory_space<vmem>>, vector<1x128xf32>
    %8 = vector.broadcast %7 : vector<1x128xf32> to vector<16x128xf32>
    %9 = arith.addf %6, %8 : vector<16x128xf32>
    %cst_8 = arith.constant 5.000000e-01 : f32
    %10 = vector.broadcast %cst_8 : f32 to vector<16x128xf32>
    %11 = arith.mulf %10, %9 : vector<16x128xf32>
    %12 = arith.mulf %9, %9 : vector<16x128xf32>
    %13 = arith.mulf %12, %9 : vector<16x128xf32>
    %cst_9 = arith.constant 4.471500e-02 : f32
    %14 = vector.broadcast %cst_9 : f32 to vector<16x128xf32>
    %15 = arith.mulf %14, %13 : vector<16x128xf32>
    %16 = arith.addf %9, %15 : vector<16x128xf32>
    %cst_10 = arith.constant 0.797884583 : f32
    %17 = vector.broadcast %cst_10 : f32 to vector<16x128xf32>
    %18 = arith.mulf %17, %16 : vector<16x128xf32>
    %19 = math.tanh %18 : vector<16x128xf32>
    %cst_11 = arith.constant 1.000000e+00 : f32
    %20 = vector.broadcast %cst_11 : f32 to vector<16x128xf32>
    %21 = arith.addf %20, %19 : vector<16x128xf32>
    %22 = arith.mulf %11, %21 : vector<16x128xf32>
    %c0_12 = arith.constant 0 : index
    %c0_13 = arith.constant 0 : index
    %23 = vector.load %arg8[%c0_12, %c0_13] : memref<16x128xf32, #tpu.memory_space<vmem>>, vector<16x128xf32>
    %cst_14 = arith.constant dense<0.000000e+00> : vector<16x128xf32>
    %24 = tpu.matmul %22, %5, %cst_14 {dimension_numbers = #tpu.dot_dimension_numbers<[1], [0], [0], [1], [0, 0, 1, 1], [], []>} : vector<16x128xf32>, vector<128x128xf32>, vector<16x128xf32> -> vector<16x128xf32>
    %25 = arith.addf %23, %24 : vector<16x128xf32>
    %c0_15 = arith.constant 0 : index
    %c0_16 = arith.constant 0 : index
    %26 = vector.load %arg8[%c0_15, %c0_16] : memref<16x128xf32, #tpu.memory_space<vmem>>, vector<16x128xf32>
    tpu.vector_store %arg8[%c0_15, %c0_16], %25 {strides = array<i32>} : memref<16x128xf32, #tpu.memory_space<vmem>>, vector<16x128xf32>,
    %c0_i32_17 = arith.constant 0 : i32
    %27 = arith.cmpi eq, %arg1, %c0_i32_17 : i32
    %28 = arith.extui %27 : i1 to i32
    %c0_i32_18 = arith.constant 0 : i32
    %29 = arith.cmpi ne, %28, %c0_i32_18 : i32
    scf.if %29 {
      %c0_19 = arith.constant 0 : index
      %c0_20 = arith.constant 0 : index
      %30 = vector.load %arg8[%c0_19, %c0_20] : memref<16x128xf32, #tpu.memory_space<vmem>>, vector<16x128xf32>
      %c0_21 = arith.constant 0 : index
      %c0_22 = arith.constant 0 : index
      %31 = vector.load %arg6[%c0_21, %c0_22] : memref<1x128xf32, #tpu.memory_space<vmem>>, vector<1x128xf32>
      %32 = vector.broadcast %31 : vector<1x128xf32> to vector<16x128xf32>
      %33 = arith.addf %30, %32 : vector<16x128xf32>
      %c0_23 = arith.constant 0 : index
      %c0_24 = arith.constant 0 : index
      %34 = vector.load %arg7[%c0_23, %c0_24] : memref<16x128xf32, #tpu.memory_space<vmem>>, vector<16x128xf32>
      tpu.vector_store %arg7[%c0_23, %c0_24], %33 {strides = array<i32>} : memref<16x128xf32, #tpu.memory_space<vmem>>, vector<16x128xf32>,
    } else {
    }
    return
  }
  func.func @transform_0(%arg0: i32, %arg1: i32) -> (i32, i32) {
    %c0_i32 = arith.constant 0 : i32
    %c0_i32_0 = arith.constant 0 : i32
    return %arg0, %c0_i32 : i32, i32
  }
  func.func @transform_1(%arg0: i32, %arg1: i32) -> (i32, i32) {
    %c0_i32 = arith.constant 0 : i32
    %c0_i32_0 = arith.constant 0 : i32
    return %c0_i32, %arg1 : i32, i32
  }
  func.func @transform_2(%arg0: i32, %arg1: i32) -> (i32, i32) {
    %c0_i32 = arith.constant 0 : i32
    %c0_i32_0 = arith.constant 0 : i32
    return %c0_i32, %arg1 : i32, i32
  }
  func.func @transform_3(%arg0: i32, %arg1: i32) -> (i32, i32) {
    %c0_i32 = arith.constant 0 : i32
    %c0_i32_0 = arith.constant 0 : i32
    return %arg1, %c0_i32 : i32, i32
  }
  func.func @transform_4(%arg0: i32, %arg1: i32) -> (i32, i32) {
    %c0_i32 = arith.constant 0 : i32
    %c0_i32_0 = arith.constant 0 : i32
    %c0_i32_1 = arith.constant 0 : i32
    return %c0_i32, %c0_i32_0 : i32, i32
  }
  func.func @transform_5(%arg0: i32, %arg1: i32) -> (i32, i32) {
    %c0_i32 = arith.constant 0 : i32
    %c0_i32_0 = arith.constant 0 : i32
    return %arg0, %c0_i32 : i32, i32
  }
}

</mosaic_0001>

<llo_original>
// kernel: tpu_custom_call.1
$region0: #{tpu_custom_call.1}
  #allocation0 [shape = 'u32[]', space=smem, size = 0x4, offset = 0x4, fixed_abs, tag = 'smem constant byte address 0x4 - core index']
  #allocation1 [shape = 'u32[72,128]{1,0:T(1,128)}', space=vmem, size = 0x9000, scoped, tag = 'internal scratch']
  #allocation2 [shape = 'f32[16,128]{1,0:T(8,128)}', space=vmem, size = 0x2000, scoped, tag = 'scratch operand']
  %s0 = inlined_call_operand.hbm [shape: f32[16,128], index: 0, kind: input, shape index: {}]
  %s1 = inlined_call_operand.hbm [shape: f32[128,128], index: 1, kind: input, shape index: {}]
  %s2 = inlined_call_operand.vmem [shape: f32[1,128], index: 2, kind: input, shape index: {}]
  %s3 = inlined_call_operand.hbm [shape: f32[128,128], index: 3, kind: input, shape index: {}]
  %s4 = inlined_call_operand.vmem [shape: f32[1,128], index: 4, kind: input, shape index: {}]
  %s5 = inlined_call_operand.hbm [shape: f32[16,128], index: 5, kind: output, shape index: {}]
  %s6 = sld [smem:[#allocation0]]
  $region50: #{tpu_custom_call.1} parent=0
    _
  %s8 = ssub.s32 1, %s6
  %s9 = scalar_select 0, %s8, %s6
  $region1: #{tpu_custom_call.1} parent=0
    #allocation3 [shape = 'u8[8192]{0}', space=vmem, size = 0x2000, scoped, tag = 'input window, operand 0, single buffered']
    #allocation4 [shape = 's32[1]{0}', space=sflag, size = 0x4, scoped, tag = 'scoped memory for tpu_custom_call.1']
    #allocation5 [shape = 's32[1]{0}', space=sflag, size = 0x4, scoped, tag = 'scoped memory for tpu_custom_call.1']
    #allocation6 [shape = 'u8[65536]{0}', space=vmem, size = 0x10000, scoped, tag = 'input window, operand 1, single buffered']
    #allocation7 [shape = 's32[1]{0}', space=sflag, size = 0x4, scoped, tag = 'scoped memory for tpu_custom_call.1']
    #allocation8 [shape = 'u8[65536]{0}', space=vmem, size = 0x10000, scoped, tag = 'input window, operand 3, single buffered']
    #allocation9 [shape = 'u8[8192]{0}', space=vmem, size = 0x2000, scoped, tag = 'output window, operand 0, single buffered']
    %10 = vsyncpa [#allocation4], 0
    %11 = vsyncpa [#allocation7], 0
    %12 = vsyncpa [#allocation5], 0
    // Predicated region
    $region2: #{tpu_custom_call.1} parent=1 // pred_check
      _
    $region3: #{tpu_custom_call.1} parent=1 // pred_check_branch
      %14 = sbr.rel (0) target = $region5
    $region4: #{tpu_custom_call.1} parent=1 // pred_region
      %16 = vsyncadd [#allocation4], 0
      %s17 = sshll.u32 %s0, 4
      %s18 = int_to_ptr.hbm [resolvable:$true] %s17
      %s19 = sshll.u32 [#allocation3], 4
      %s20 = int_to_ptr.vmem [resolvable:$true] %s19
      %25 = dma.hbm_to_vmem [thread:$0]  %s18, 256, %s20, [#allocation4], 128, 128, 8
    $region5: #{tpu_custom_call.1} parent=1 // pred_fallthru
      _
    // Predicated region
    $region6: #{tpu_custom_call.1} parent=1 // pred_check
      _
    $region7: #{tpu_custom_call.1} parent=1 // pred_check_branch
      %27 = sbr.rel (0) target = $region9
    $region8: #{tpu_custom_call.1} parent=1 // pred_region
      %29 = vsyncadd [#allocation7], 0
      %s30 = sshll.u32 %s1, 4
      %s31 = int_to_ptr.hbm [resolvable:$true] %s30
      %s32 = sshll.u32 [#allocation6], 4
      %s33 = int_to_ptr.vmem [resolvable:$true] %s32
      %38 = dma.hbm_to_vmem [thread:$0]  %s31, 2048, %s33, [#allocation7], 128, 128, 8
    $region9: #{tpu_custom_call.1} parent=1 // pred_fallthru
      _
    // Predicated region
    $region10: #{tpu_custom_call.1} parent=1 // pred_check
      _
    $region11: #{tpu_custom_call.1} parent=1 // pred_check_branch
      %40 = sbr.rel (0) target = $region13
    $region12: #{tpu_custom_call.1} parent=1 // pred_region
      _
    $region13: #{tpu_custom_call.1} parent=1 // pred_fallthru
      _
    // Predicated region
    $region14: #{tpu_custom_call.1} parent=1 // pred_check
      _
    $region15: #{tpu_custom_call.1} parent=1 // pred_check_branch
      %42 = sbr.rel (0) target = $region17
    $region16: #{tpu_custom_call.1} parent=1 // pred_region
      %44 = vsyncadd [#allocation7], 0
      %s45 = sshll.u32 %s3, 4
      %s46 = int_to_ptr.hbm [resolvable:$true] %s45
      %s47 = sshll.u32 [#allocation8], 4
      %s48 = int_to_ptr.vmem [resolvable:$true] %s47
      %53 = dma.hbm_to_vmem [thread:$0]  %s46, 2048, %s48, [#allocation7], 128, 128, 8
    $region17: #{tpu_custom_call.1} parent=1 // pred_fallthru
      _
    // Predicated region
    $region18: #{tpu_custom_call.1} parent=1 // pred_check
      _
    $region19: #{tpu_custom_call.1} parent=1 // pred_check_branch
      %55 = sbr.rel (0) target = $region21
    $region20: #{tpu_custom_call.1} parent=1 // pred_region
      _
    $region21: #{tpu_custom_call.1} parent=1 // pred_fallthru
      _
    // Predicated region
    $region22: #{tpu_custom_call.1} parent=1 // pred_check
      _
    $region23: #{tpu_custom_call.1} parent=1 // pred_check_branch
      %57 = sbr.rel (0) target = $region25
    $region24: #{tpu_custom_call.1} parent=1 // pred_region
      %59 = dma.done [#allocation4], 256
    $region25: #{tpu_custom_call.1} parent=1 // pred_fallthru
      _
    // Predicated region
    $region26: #{tpu_custom_call.1} parent=1 // pred_check
      _
    $region27: #{tpu_custom_call.1} parent=1 // pred_check_branch
      %61 = sbr.rel (0) target = $region29
    $region28: #{tpu_custom_call.1} parent=1 // pred_region
      %63 = dma.done [#allocation7], 2048
    $region29: #{tpu_custom_call.1} parent=1 // pred_fallthru
      _
    // Predicated region
    $region30: #{tpu_custom_call.1} parent=1 // pred_check
      _
    $region31: #{tpu_custom_call.1} parent=1 // pred_check_branch
      %65 = sbr.rel (0) target = $region33
    $region32: #{tpu_custom_call.1} parent=1 // pred_region
      %67 = dma.done [#allocation7], 2048
    $region33: #{tpu_custom_call.1} parent=1 // pred_fallthru
      _
    %p68 = scmp.eq.s32.totalorder 0, 0
    // Predicated region
    $region34: #{tpu_custom_call.1} parent=1 // pred_check
      %p69 = pneg %p68
    $region35: #{tpu_custom_call.1} parent=1 // pred_check_branch
      %71 = sbr.rel (%p69) target = $region37
    $region36: #{tpu_custom_call.1} parent=1 // pred_region
      %72 = vst [vmem:[#allocation2] sm:$0xff] 0.0
      %73 = vst [vmem:[#allocation2 + $0x8] sm:$0xff] 0.0
    $region37: #{tpu_custom_call.1} parent=1 // pred_fallthru
      _
    %v74 = vld [vmem:[#allocation3] sm:$0xff]
    %v75 = vld [vmem:[#allocation3 + $0x8] sm:$0xff]
    %v76 = vld [vmem:[#allocation6] sm:$0xff]
    %v77 = vld [vmem:[#allocation6 + $0x8] sm:$0xff]
    %v78 = vld [vmem:[#allocation6 + $0x10] sm:$0xff]
    %v79 = vld [vmem:[#allocation6 + $0x18] sm:$0xff]
    %v80 = vld [vmem:[#allocation6 + $0x20] sm:$0xff]
    %v81 = vld [vmem:[#allocation6 + $0x28] sm:$0xff]
    %v82 = vld [vmem:[#allocation6 + $0x30] sm:$0xff]
    %v83 = vld [vmem:[#allocation6 + $0x38] sm:$0xff]
    %v84 = vld [vmem:[#allocation6 + $0x40] sm:$0xff]
    %v85 = vld [vmem:[#allocation6 + $0x48] sm:$0xff]
    %v86 = vld [vmem:[#allocation6 + $0x50] sm:$0xff]
    %v87 = vld [vmem:[#allocation6 + $0x58] sm:$0xff]
    %v88 = vld [vmem:[#allocation6 + $0x60] sm:$0xff]
    %v89 = vld [vmem:[#allocation6 + $0x68] sm:$0xff]
    %v90 = vld [vmem:[#allocation6 + $0x70] sm:$0xff]
    %v91 = vld [vmem:[#allocation6 + $0x78] sm:$0xff]
    %v92 = vld [vmem:[#allocation8] sm:$0xff]
    %v93 = vld [vmem:[#allocation8 + $0x8] sm:$0xff]
    %v94 = vld [vmem:[#allocation8 + $0x10] sm:$0xff]
    %v95 = vld [vmem:[#allocation8 + $0x18] sm:$0xff]
    %v96 = vld [vmem:[#allocation8 + $0x20] sm:$0xff]
    %v97 = vld [vmem:[#allocation8 + $0x28] sm:$0xff]
    %v98 = vld [vmem:[#allocation8 + $0x30] sm:$0xff]
    %v99 = vld [vmem:[#allocation8 + $0x38] sm:$0xff]
    %v100 = vld [vmem:[#allocation8 + $0x40] sm:$0xff]
    %v101 = vld [vmem:[#allocation8 + $0x48] sm:$0xff]
    %v102 = vld [vmem:[#allocation8 + $0x50] sm:$0xff]
    %v103 = vld [vmem:[#allocation8 + $0x58] sm:$0xff]
    %v104 = vld [vmem:[#allocation8 + $0x60] sm:$0xff]
    %v105 = vld [vmem:[#allocation8 + $0x68] sm:$0xff]
    %v106 = vld [vmem:[#allocation8 + $0x70] sm:$0xff]
    %v107 = vld [vmem:[#allocation8 + $0x78] sm:$0xff]
    %v108 = vld [vmem:[%s2] sm:$0x1]
    %v110 = vperm.slane %v108, 0
    %112 = vmatpush.msra.mxu0 %v91
    %113 = vmatpush.msra.mxu0 %v90
    %114 = vmatpush.msra.mxu0 %v89
    %115 = vmatpush.msra.mxu0 %v88
    %116 = vmatpush.msra.mxu0 %v87
    %117 = vmatpush.msra.mxu0 %v86
    %118 = vmatpush.msra.mxu0 %v85
    %119 = vmatpush.msra.mxu0 %v84
    %120 = vmatpush.msra.mxu0 %v83
    %121 = vmatpush.msra.mxu0 %v82
    %122 = vmatpush.msra.mxu0 %v81
    %123 = vmatpush.msra.mxu0 %v80
    %124 = vmatpush.msra.mxu0 %v79
    %125 = vmatpush.msra.mxu0 %v78
    %126 = vmatpush.msra.mxu0 %v77
    %127 = vmatpush.msra.mxu0 %v76
    %128 = vmatmul.f32.gmra.mxu0 %v74
    %v129 = vpop.f32.mrf.mxu0
    %v130 = vadd.f32 %v110, %v129
    %131 = vmatmul.f32.gmra.mxu0 %v75
    %v132 = vpop.f32.mrf.mxu0
    %v133 = vadd.f32 %v110, %v132
    %134 = vdwg.mxu0
    %v135 = vmul.f32 %v130, 0.5
    %v136 = vmul.f32 %v133, 0.5
    %v137 = vmul.f32 %v130, %v130
    %v138 = vmul.f32 %v133, %v133
    %v139 = vmul.f32 %v137, %v130
    %v140 = vmul.f32 %v138, %v133
    %v141 = vmul.f32 %v139, 0.044715
    %v142 = vmul.f32 %v140, 0.044715
    %v143 = vadd.f32 %v130, %v141
    %v144 = vadd.f32 %v133, %v142
    %v145 = vmul.f32 %v143, 0.7978846
    %v146 = vmul.f32 %v144, 0.7978846
    %v147 = vtanh.pop %v145
    %v148 = vtanh.pop %v146
    %v149 = vadd.f32 %v147, 1.0
    %v150 = vadd.f32 %v148, 1.0
    %v151 = vmul.f32 %v135, %v149
    %v152 = vmul.f32 %v136, %v150
    %v153 = vld [vmem:[#allocation2] sm:$0xff]
    %v154 = vld [vmem:[#allocation2 + $0x8] sm:$0xff]
    %155 = vmatpush.msra.mxu0 %v107
    %156 = vmatpush.msra.mxu0 %v106
    %157 = vmatpush.msra.mxu0 %v105
    %158 = vmatpush.msra.mxu0 %v104
    %159 = vmatpush.msra.mxu0 %v103
    %160 = vmatpush.msra.mxu0 %v102
    %161 = vmatpush.msra.mxu0 %v101
    %162 = vmatpush.msra.mxu0 %v100
    %163 = vmatpush.msra.mxu0 %v99
    %164 = vmatpush.msra.mxu0 %v98
    %165 = vmatpush.msra.mxu0 %v97
    %166 = vmatpush.msra.mxu0 %v96
    %167 = vmatpush.msra.mxu0 %v95
    %168 = vmatpush.msra.mxu0 %v94
    %169 = vmatpush.msra.mxu0 %v93
    %170 = vmatpush.msra.mxu0 %v92
    %171 = vmatmul.f32.gmra.mxu0 %v151
    %v172 = vpop.f32.mrf.mxu0
    %v173 = vadd.f32 0.0, %v172
    %174 = vmatmul.f32.gmra.mxu0 %v152
    %v175 = vpop.f32.mrf.mxu0
    %v176 = vadd.f32 0.0, %v175
    %177 = vdwg.mxu0
    %v178 = vadd.f32 %v153, %v173
    %v179 = vadd.f32 %v154, %v176
    %180 = vst [vmem:[#allocation2] sm:$0xff] %v178
    %181 = vst [vmem:[#allocation2 + $0x8] sm:$0xff] %v179
    // Predicated region
    $region38: #{tpu_custom_call.1} parent=1 // pred_check
      %p182 = pneg %p68
    $region39: #{tpu_custom_call.1} parent=1 // pred_check_branch
      %184 = sbr.rel (%p182) target = $region41
    $region40: #{tpu_custom_call.1} parent=1 // pred_region
      %v185 = vld [vmem:[#allocation2] sm:$0xff]
      %v186 = vld [vmem:[#allocation2 + $0x8] sm:$0xff]
      %v187 = vld [vmem:[%s4] sm:$0x1]
      %v189 = vperm.slane %v187, 0
      %v191 = vadd.f32 %v185, %v189
      %v192 = vadd.f32 %v186, %v189
      %193 = vst [vmem:[#allocation9] sm:$0xff] %v191
      %194 = vst [vmem:[#allocation9 + $0x8] sm:$0xff] %v192
    $region41: #{tpu_custom_call.1} parent=1 // pred_fallthru
      _
    // Predicated region
    $region42: #{tpu_custom_call.1} parent=1 // pred_check
      _
    $region43: #{tpu_custom_call.1} parent=1 // pred_check_branch
      %196 = sbr.rel (0) target = $region45
    $region44: #{tpu_custom_call.1} parent=1 // pred_region
      %198 = vsyncadd [#allocation5], 0
      %s199 = sshll.u32 [#allocation9], 4
      %s200 = int_to_ptr.vmem [resolvable:$true] %s199
      %s201 = sshll.u32 %s5, 4
      %s202 = int_to_ptr.hbm [resolvable:$true] %s201
      %207 = dma.vmem_to_hbm [thread:$0]  %s200, 256, %s202, [#allocation5], 128, 128, 8
    $region45: #{tpu_custom_call.1} parent=1 // pred_fallthru
      _
    // Predicated region
    $region46: #{tpu_custom_call.1} parent=1 // pred_check
      _
    $region47: #{tpu_custom_call.1} parent=1 // pred_check_branch
      %209 = sbr.rel (0) target = $region49
    $region48: #{tpu_custom_call.1} parent=1 // pred_region
      %211 = dma.done [#allocation5], 256
    $region49: #{tpu_custom_call.1} parent=1 // pred_fallthru
      _
    %212 = vsyncpa [#allocation4], 1
    %213 = vsyncpa [#allocation7], 1
    %214 = vsyncpa [#allocation5], 1

</llo_original>
